<compile_context>
chip_gen: v7x
topology: tpu7x:2x2x1
jax: 0.10.0
libtpu: 0.0.40
codegen_flags: <defaults>
</compile_context>

<pallas_src>
import functools
import numpy as np
import jax
import jax.numpy as jnp
from jax.experimental import pallas as pl
from jax.experimental.pallas import tpu as pltpu


# ------------------------------ small helpers --------------------------------

def _round_up(x, m):
    return ((x + m - 1) // m) * m


def _pick_seq_tile(t, cap=256):
    """Largest multiple-of-8 divisor of t that is <= cap; falls back to t."""
    if t <= cap:
        return t
    for cand in range(cap, 7, -1):
        if t % cand == 0 and cand % 8 == 0:
            return cand
    return t  # TODO(synk): ragged query tiles for awkward T


def _vmem_limit_bytes(working_set_bytes):
    """Explicit scoped-VMEM budget: 2x the estimated working set, floored at the
    smallest default (16 MiB, v5e) and capped at 3/4 of physical VMEM so it is
    safe on v7x (64 MiB) while still allowing big tiles on v5e/v6e (128 MiB)."""
    try:
        phys = int(pltpu.get_tpu_info().vmem_capacity_bytes)
    except Exception:
        phys = 64 * 2**20
    cap = (3 * phys) // 4
    return int(min(max(2 * working_set_bytes, 16 * 2**20), cap))


# ----------------------- fused attention + LayerNorm1 ------------------------

def _attn_ln_kernel(x_ref, wqkv_ref, wo_ref, g_ref, b_ref, o_ref, qkv_ref,
                    *, n_head, d_head, t_q, scale, eps, compute_dtype):
    # x_ref:    [T, D]        f32   (full sequence of one batch element)
    # wqkv_ref: [D, 3*H*Dh]   compute_dtype  (fused [Wq^T | Wk^T | Wv^T])
    # wo_ref:   [H*Dh, D]     compute_dtype
    # g_ref/b_ref: [1, D]     f32
    # o_ref:    [Tq, D]       f32   (one query tile of the LN1 output)
    # qkv_ref:  [T, 3*H*Dh]   compute_dtype  VMEM scratch, cached across q tiles
    qi = pl.program_id(1)
    hd = n_head * d_head
    exact_f32 = jnp.dtype(compute_dtype) == jnp.dtype(jnp.float32)

    # One fused QKV projection per batch element, cached in VMEM scratch.
    @pl.when(qi == 0)
    def _():
        qkv_ref[...] = jnp.dot(
            x_ref[...].astype(compute_dtype), wqkv_ref[...],
            preferred_element_type=jnp.float32).astype(compute_dtype)

    q_start = pl.multiple_of(qi * t_q, t_q)
    q_rows = qkv_ref[pl.ds(q_start, t_q), :]          # [Tq, 3*hd]
    q = q_rows[:, :hd]                                # [Tq, hd]
    k = qkv_ref[:, hd:2 * hd]                         # [T, hd]
    v = qkv_ref[:, 2 * hd:]                           # [T, hd]

    # Per-head attention.  Head outputs land in disjoint lane slices; they are
    # concatenated and projected with ONE full-depth [Tq, hd] x [hd, D] matmul.
    av_heads = []
    for h in range(n_head):
        sl = slice(h * d_head, (h + 1) * d_head)
        s = jax.lax.dot_general(q[:, sl], k[:, sl], (((1,), (1,)), ((), ())),
                                preferred_element_type=jnp.float32) * scale  # [Tq, T]
        m = jnp.max(s, axis=-1, keepdims=True)
        e = jnp.exp(s - m)
        denom = jnp.sum(e, axis=-1, keepdims=True)
        # exact normalization in the f32 path; EUP approx reciprocal for bf16
        p = e * pl.reciprocal(denom, approx=not exact_f32)
        av_heads.append(jnp.dot(p.astype(compute_dtype), v[:, sl],
                                preferred_element_type=jnp.float32))         # [Tq, Dh]
    av = jnp.concatenate(av_heads, axis=-1).astype(compute_dtype)            # [Tq, hd]
    attn_out = jnp.dot(av, wo_ref[...], preferred_element_type=jnp.float32)  # [Tq, D]

    # residual + LayerNorm1 (f32 epilogue)
    z = x_ref[pl.ds(q_start, t_q), :] + attn_out
    mu = jnp.mean(z, axis=-1, keepdims=True)
    var = jnp.mean((z - mu) ** 2, axis=-1, keepdims=True)
    o_ref[...] = ((z - mu) * jax.lax.rsqrt(var + eps)) * g_ref[...] + b_ref[...]


def attention_block(x_btd, wqkv_t, wo_t, gamma, beta, *, n_head, d_head,
                    eps=1e-5, compute_dtype=jnp.bfloat16, q_tile_cap=256):
    """x_btd: [B, T, D] f32 -> LayerNorm(x + MultiHeadAttn(x)), [B, T, D] f32."""
    B, T, D = x_btd.shape
    hd = n_head * d_head
    t_q = _pick_seq_tile(T, q_tile_cap)   # 256 default; use 128 on v5e if desired
    nq = T // t_q
    scale = 1.0 / (d_head ** 0.5)
    cs = jnp.dtype(compute_dtype).itemsize

    working = (2 * T * D * 4                 # x block (double-buffered)
               + D * 3 * hd * cs             # fused QKV weight (Buffered(1))
               + hd * D * cs                 # Wo (Buffered(1))
               + T * 3 * hd * cs             # QKV VMEM scratch
               + 2 * t_q * D * 4             # out block (double-buffered)
               + 4 * t_q * T * 4             # score / exp / prob temporaries
               + t_q * (4 * hd + 4 * D) * 4)  # q rows / av / attn_out / z

    kernel = functools.partial(_attn_ln_kernel, n_head=n_head, d_head=d_head,
                               t_q=t_q, scale=scale, eps=eps,
                               compute_dtype=compute_dtype)
    return pl.pallas_call(
        kernel,
        out_shape=jax.ShapeDtypeStruct((B, T, D), jnp.float32),
        grid=(B, nq),
        in_specs=[
            pl.BlockSpec((None, T, D), lambda b, qi: (b, 0, 0)),      # x (batch squeezed)
            pl.BlockSpec((D, 3 * hd), lambda b, qi: (0, 0),
                         pipeline_mode=pl.Buffered(1)),               # Wqkv^T (single buf)
            pl.BlockSpec((hd, D), lambda b, qi: (0, 0),
                         pipeline_mode=pl.Buffered(1)),               # Wo^T   (single buf)
            pl.BlockSpec((1, D), lambda b, qi: (0, 0)),               # gamma
            pl.BlockSpec((1, D), lambda b, qi: (0, 0)),               # beta
        ],
        out_specs=pl.BlockSpec((None, t_q, D), lambda b, qi: (b, qi, 0)),
        scratch_shapes=[pltpu.VMEM((T, 3 * hd), compute_dtype)],
        compiler_params=pltpu.CompilerParams(
            dimension_semantics=("parallel", "arbitrary"),
            vmem_limit_bytes=_vmem_limit_bytes(working)),
    )(x_btd.astype(jnp.float32),
      wqkv_t.astype(compute_dtype), wo_t.astype(compute_dtype),
      gamma.reshape(1, D).astype(jnp.float32),
      beta.reshape(1, D).astype(jnp.float32))


# -------------------------- fused FFN + LayerNorm2 ----------------------------

def _ffn_ln_kernel(h_ref, w1_ref, b1_ref, w2_ref, b2_ref, g_ref, be_ref, o_ref,
                   *, eps, compute_dtype):
    # h_ref: [tm, D] f32 row tile.  w1: [D, d_inner], w2: [d_inner, D] compute_dtype.
    h = h_ref[...]
    y = jnp.dot(h.astype(compute_dtype), w1_ref[...],
                preferred_element_type=jnp.float32) + b1_ref[...]
    y = jnp.maximum(y, 0.0)
    y = jnp.dot(y.astype(compute_dtype), w2_ref[...],
                preferred_element_type=jnp.float32) + b2_ref[...]
    z = h + y
    mu = jnp.mean(z, axis=-1, keepdims=True)
    var = jnp.mean((z - mu) ** 2, axis=-1, keepdims=True)
    o_ref[...] = ((z - mu) * jax.lax.rsqrt(var + eps)) * g_ref[...] + be_ref[...]


def ffn_block(h_nd, w1_t, b1, w2_t, b2, gamma, beta, *, eps=1e-5,
              compute_dtype=jnp.bfloat16, row_tile_cap=512):
    """h_nd: [N, D] f32 -> LayerNorm(h + W2(relu(W1 h + b1)) + b2), [N, D] f32."""
    N, D = h_nd.shape
    d_inner = w1_t.shape[1]
    # row_tile_cap=512 suits v5e/v6e (128 MiB VMEM); on v7x (64 MiB) 256 is safer.
    tm = row_tile_cap if N >= row_tile_cap else _round_up(N, 8)
    n_pad = _round_up(N, tm)
    h = h_nd.astype(jnp.float32)
    if n_pad != N:
        h = jnp.pad(h, ((0, n_pad - N), (0, 0)))   # aligned tiles, unmasked stores

    cs = jnp.dtype(compute_dtype).itemsize
    working = (4 * tm * D * 4                      # in/out blocks (double-buffered)
               + D * d_inner * cs + d_inner * D * cs   # W1/W2 (Buffered(1))
               + 2 * tm * d_inner * 4              # [tm, d_inner] intermediate
               + 2 * tm * D * 4)                   # residual / LN temporaries

    kernel = functools.partial(_ffn_ln_kernel, eps=eps, compute_dtype=compute_dtype)
    out = pl.pallas_call(
        kernel,
        out_shape=jax.ShapeDtypeStruct((n_pad, D), jnp.float32),
        grid=(n_pad // tm,),
        in_specs=[
            pl.BlockSpec((tm, D), lambda i: (i, 0)),                  # h row tile
            pl.BlockSpec((D, d_inner), lambda i: (0, 0),
                         pipeline_mode=pl.Buffered(1)),               # W1^T (single buf)
            pl.BlockSpec((1, d_inner), lambda i: (0, 0)),             # b1
            pl.BlockSpec((d_inner, D), lambda i: (0, 0),
                         pipeline_mode=pl.Buffered(1)),               # W2^T (single buf)
            pl.BlockSpec((1, D), lambda i: (0, 0)),                   # b2
            pl.BlockSpec((1, D), lambda i: (0, 0)),                   # gamma
            pl.BlockSpec((1, D), lambda i: (0, 0)),                   # beta
        ],
        out_specs=pl.BlockSpec((tm, D), lambda i: (i, 0)),
        compiler_params=pltpu.CompilerParams(
            dimension_semantics=("parallel",),
            vmem_limit_bytes=_vmem_limit_bytes(working)),
    )(h, w1_t.astype(compute_dtype), b1.reshape(1, d_inner).astype(jnp.float32),
      w2_t.astype(compute_dtype), b2.reshape(1, D).astype(jnp.float32),
      gamma.reshape(1, D).astype(jnp.float32),
      beta.reshape(1, D).astype(jnp.float32))
    return out[:N] if n_pad != N else out


# -------------------------------- forward pass --------------------------------

def encoder_layer_forward(x, params, n_head, d_head, compute_dtype=jnp.bfloat16):
    """x: [T, B, d_model] -> [T, B, d_model].  Matches EncoderLayer.forward with
    attn_mask=None, mems=None, pre_lnorm=False, dropout=identity."""
    T, B, D = x.shape
    x_btd = jnp.transpose(x, (1, 0, 2))                                   # [B, T, D]
    # Fused QKV weight: columns [0:hd]=Q, [hd:2hd]=K, [2hd:3hd]=V (matches torch.chunk).
    wqkv_t = jnp.concatenate([params["Wq"].T, params["Wkv"].T], axis=1)   # [D, 3*hd]
    h = attention_block(x_btd, wqkv_t, params["Wo"].T,
                        params["ln1_g"], params["ln1_b"],
                        n_head=n_head, d_head=d_head, compute_dtype=compute_dtype)
    out = ffn_block(h.reshape(B * T, D), params["W1"].T, params["b1"],
                    params["W2"].T, params["b2"],
                    params["ln2_g"], params["ln2_b"], compute_dtype=compute_dtype)
    return jnp.transpose(out.reshape(B, T, D), (1, 0, 2))                 # [T, B, D]


# ----------------------------- pure-JAX reference ------------------------------

def _reference_forward(x, params, n_head, d_head):
    T, B, D = x.shape
    H, Dh = n_head, d_head
    scale = 1.0 / (Dh ** 0.5)

    def ln(z, g, b, eps=1e-5):
        mu = jnp.mean(z, axis=-1, keepdims=True)
        var = jnp.mean((z - mu) ** 2, axis=-1, keepdims=True)
        return (z - mu) / jnp.sqrt(var + eps) * g + b

    head_q = x @ params["Wq"].T
    head_kv = x @ params["Wkv"].T
    head_k, head_v = jnp.split(head_kv, 2, axis=-1)
    hq = head_q.reshape(T, B, H, Dh)
    hk = head_k.reshape(T, B, H, Dh)
    hv = head_v.reshape(T, B, H, Dh)
    s = jnp.einsum("ibnd,jbnd->ijbn", hq, hk) * scale
    p = jax.nn.softmax(s, axis=1)
    av = jnp.einsum("ijbn,jbnd->ibnd", p, hv).reshape(T, B, H * Dh)
    attn_out = av @ params["Wo"].T
    h = ln(x + attn_out, params["ln1_g"], params["ln1_b"])
    ff = jax.nn.relu(h @ params["W1"].T + params["b1"]) @ params["W2"].T + params["b2"]
    return ln(h + ff, params["ln2_g"], params["ln2_b"])


# ------------------------------------ main -------------------------------------

if __name__ == "__main__":
    # small shapes consistent with the module
    T, B = 8, 2                 # seq_len, batch
    n_head, d_head = 2, 16
    d_model = 32
    d_inner = 64

    key = jax.random.PRNGKey(0)
    ks = jax.random.split(key, 8)

    def init(k, shape, scale=0.05):
        return (scale * jax.random.normal(k, shape)).astype(jnp.float32)

    params = {
        "Wq":  init(ks[0], (n_head * d_head, d_model)),
        "Wkv": init(ks[1], (2 * n_head * d_head, d_model)),
        "Wo":  init(ks[2], (d_model, n_head * d_head)),
        "ln1_g": jnp.ones((d_model,), jnp.float32),
        "ln1_b": jnp.zeros((d_model,), jnp.float32),
        "W1":  init(ks[3], (d_inner, d_model)),
        "b1":  init(ks[4], (d_inner,)),
        "W2":  init(ks[5], (d_model, d_inner)),
        "b2":  init(ks[6], (d_model,)),
        "ln2_g": jnp.ones((d_model,), jnp.float32),
        "ln2_b": jnp.zeros((d_model,), jnp.float32),
    }

    x = jax.random.normal(ks[7], (T, d_model * 0 + B, d_model), dtype=jnp.float32)

    ref = _reference_forward(x, params, n_head, d_head)

    # f32 matmul path (tight check; exact softmax normalization)
    out_f32 = jax.block_until_ready(
        encoder_layer_forward(x, params, n_head, d_head, compute_dtype=jnp.float32))
    np.testing.assert_allclose(np.asarray(out_f32), np.asarray(ref),
                               rtol=5e-3, atol=5e-3)

    # bf16 matmul path (production default: bf16 MXU inputs, f32 accumulate/epilogue)
    out_bf16 = jax.block_until_ready(
        encoder_layer_forward(x, params, n_head, d_head, compute_dtype=jnp.bfloat16))
    np.testing.assert_allclose(np.asarray(out_bf16), np.asarray(ref),
                               rtol=3e-2, atol=3e-2)

    print("KERNEL_OK")
</pallas_src>

<mosaic_0001>
module attributes {stable_mosaic.version = 11 : i64} {
  func.func @_attn_ln_kernel(%arg0: i32, %arg1: i32, %arg2: memref<1x8x32xf32, #tpu.memory_space<vmem>>, %arg3: memref<32x96xf32, #tpu.memory_space<vmem>>, %arg4: memref<32x32xf32, #tpu.memory_space<vmem>>, %arg5: memref<1x32xf32, #tpu.memory_space<vmem>>, %arg6: memref<1x32xf32, #tpu.memory_space<vmem>>, %arg7: memref<1x8x32xf32, #tpu.memory_space<vmem>>, %arg8: memref<8x96xf32, #tpu.memory_space<vmem>>) attributes {dimension_semantics = [#tpu.dimension_semantics<parallel>, #tpu.dimension_semantics<arbitrary>], iteration_bounds = array<i64: 2, 1>, scalar_prefetch = 0 : i64, scratch_operands = 1 : i64, tpu.core_type = #tpu.core_type<tc>, window_params = [{transform_indices = @transform_0, window_bounds = array<i64: 1, 8, 32>}, {pipeline_mode = #tpu.pipeline_mode<synchronous>, transform_indices = @transform_1, window_bounds = array<i64: 32, 96>}, {pipeline_mode = #tpu.pipeline_mode<synchronous>, transform_indices = @transform_2, window_bounds = array<i64: 32, 32>}, {pipeline_mode = #tpu.pipeline_mode<synchronous>, transform_indices = @transform_3, window_bounds = array<i64: 1, 32>}, {pipeline_mode = #tpu.pipeline_mode<synchronous>, transform_indices = @transform_4, window_bounds = array<i64: 1, 32>}, {transform_indices = @transform_5, window_bounds = array<i64: 1, 8, 32>}]} {
    %c0_i32 = arith.constant 0 : i32
    %0 = arith.cmpi eq, %arg1, %c0_i32 : i32
    %1 = arith.extui %0 : i1 to i32
    %c0_i32_0 = arith.constant 0 : i32
    %2 = arith.cmpi ne, %1, %c0_i32_0 : i32
    scf.if %2 {
      %c0_29 = arith.constant 0 : index
      %c0_30 = arith.constant 0 : index
      %c0_31 = arith.constant 0 : index
      %78 = vector.load %arg2[%c0_29, %c0_30, %c0_31] : memref<1x8x32xf32, #tpu.memory_space<vmem>>, vector<1x8x32xf32>
      %79 = vector.shape_cast %78 : vector<1x8x32xf32> to vector<8x32xf32>
      %c0_32 = arith.constant 0 : index
      %c0_33 = arith.constant 0 : index
      %80 = vector.load %arg3[%c0_32, %c0_33] : memref<32x96xf32, #tpu.memory_space<vmem>>, vector<32x96xf32>
      %cst_34 = arith.constant dense<0.000000e+00> : vector<8x96xf32>
      %81 = tpu.matmul %79, %80, %cst_34 {dimension_numbers = #tpu.dot_dimension_numbers<[1], [0], [0], [1], [0, 0, 1, 1], [], []>} : vector<8x32xf32>, vector<32x96xf32>, vector<8x96xf32> -> vector<8x96xf32>
      %c0_35 = arith.constant 0 : index
      %c0_36 = arith.constant 0 : index
      %82 = vector.load %arg8[%c0_35, %c0_36] : memref<8x96xf32, #tpu.memory_space<vmem>>, vector<8x96xf32>
      tpu.vector_store %arg8[%c0_35, %c0_36], %81 {strides = array<i32>} : memref<8x96xf32, #tpu.memory_space<vmem>>, vector<8x96xf32>,
    } else {
    }
    %c8_i32 = arith.constant 8 : i32
    %3 = arith.muli %arg1, %c8_i32 : i32
    %4 = tpu.assume_multiple %3, 8 : i32
    %5 = arith.index_cast %4 : i32 to index
    %c0 = arith.constant 0 : index
    %6 = vector.load %arg8[%5, %c0] : memref<8x96xf32, #tpu.memory_space<vmem>>, vector<8x96xf32>
    %7 = vector.extract_strided_slice %6 {offsets = [0, 0], sizes = [8, 32], strides = [1, 1]} : vector<8x96xf32> to vector<8x32xf32>
    %c0_1 = arith.constant 0 : index
    %c32 = arith.constant 32 : index
    %8 = vector.load %arg8[%c0_1, %c32] : memref<8x96xf32, #tpu.memory_space<vmem>>, vector<8x32xf32>
    %c0_2 = arith.constant 0 : index
    %c64 = arith.constant 64 : index
    %9 = vector.load %arg8[%c0_2, %c64] : memref<8x96xf32, #tpu.memory_space<vmem>>, vector<8x32xf32>
    %10 = vector.extract_strided_slice %7 {offsets = [0, 0], sizes = [8, 16], strides = [1, 1]} : vector<8x32xf32> to vector<8x16xf32>
    %11 = vector.extract_strided_slice %8 {offsets = [0, 0], sizes = [8, 16], strides = [1, 1]} : vector<8x32xf32> to vector<8x16xf32>
    %cst = arith.constant dense<0.000000e+00> : vector<8x8xf32>
    %12 = tpu.matmul %10, %11, %cst {dimension_numbers = #tpu.dot_dimension_numbers<[1], [1], [0], [0], [0, 0, 1, 0], [], []>} : vector<8x16xf32>, vector<8x16xf32>, vector<8x8xf32> -> vector<8x8xf32>
    %cst_3 = arith.constant 2.500000e-01 : f32
    %13 = vector.broadcast %cst_3 : f32 to vector<8x8xf32>
    %14 = arith.mulf %12, %13 : vector<8x8xf32>
    %cst_4 = arith.constant dense<0xFF800000> : vector<8xf32>
    %15 = vector.multi_reduction <maximumf>, %14, %cst_4 [1] : vector<8x8xf32> to vector<8xf32>
    %16 = vector.shape_cast %15 : vector<8xf32> to vector<8x1xf32>
    %17 = vector.broadcast %16 : vector<8x1xf32> to vector<8x8xf32>
    %18 = arith.subf %14, %17 : vector<8x8xf32>
    %19 = math.exp %18 : vector<8x8xf32>
    %cst_5 = arith.constant dense<0.000000e+00> : vector<8xf32>
    %20 = vector.multi_reduction <add>, %19, %cst_5 [1] : vector<8x8xf32> to vector<8xf32>
    %21 = vector.shape_cast %20 : vector<8xf32> to vector<8x1xf32>
    %22 = tpu.reciprocal %21 : vector<8x1xf32> -> vector<8x1xf32>
    %23 = vector.broadcast %22 : vector<8x1xf32> to vector<8x8xf32>
    %24 = arith.mulf %19, %23 : vector<8x8xf32>
    %25 = vector.extract_strided_slice %9 {offsets = [0, 0], sizes = [8, 16], strides = [1, 1]} : vector<8x32xf32> to vector<8x16xf32>
    %cst_6 = arith.constant dense<0.000000e+00> : vector<8x16xf32>
    %26 = tpu.matmul %24, %25, %cst_6 {dimension_numbers = #tpu.dot_dimension_numbers<[1], [0], [0], [1], [0, 0, 1, 1], [], []>} : vector<8x8xf32>, vector<8x16xf32>, vector<8x16xf32> -> vector<8x16xf32>
    %27 = vector.extract_strided_slice %7 {offsets = [0, 16], sizes = [8, 16], strides = [1, 1]} : vector<8x32xf32> to vector<8x16xf32>
    %28 = vector.extract_strided_slice %8 {offsets = [0, 16], sizes = [8, 16], strides = [1, 1]} : vector<8x32xf32> to vector<8x16xf32>
    %cst_7 = arith.constant dense<0.000000e+00> : vector<8x8xf32>
    %29 = tpu.matmul %27, %28, %cst_7 {dimension_numbers = #tpu.dot_dimension_numbers<[1], [1], [0], [0], [0, 0, 1, 0], [], []>} : vector<8x16xf32>, vector<8x16xf32>, vector<8x8xf32> -> vector<8x8xf32>
    %cst_8 = arith.constant 2.500000e-01 : f32
    %30 = vector.broadcast %cst_8 : f32 to vector<8x8xf32>
    %31 = arith.mulf %29, %30 : vector<8x8xf32>
    %cst_9 = arith.constant dense<0xFF800000> : vector<8xf32>
    %32 = vector.multi_reduction <maximumf>, %31, %cst_9 [1] : vector<8x8xf32> to vector<8xf32>
    %33 = vector.shape_cast %32 : vector<8xf32> to vector<8x1xf32>
    %34 = vector.broadcast %33 : vector<8x1xf32> to vector<8x8xf32>
    %35 = arith.subf %31, %34 : vector<8x8xf32>
    %36 = math.exp %35 : vector<8x8xf32>
    %cst_10 = arith.constant dense<0.000000e+00> : vector<8xf32>
    %37 = vector.multi_reduction <add>, %36, %cst_10 [1] : vector<8x8xf32> to vector<8xf32>
    %38 = vector.shape_cast %37 : vector<8xf32> to vector<8x1xf32>
    %39 = tpu.reciprocal %38 : vector<8x1xf32> -> vector<8x1xf32>
    %40 = vector.broadcast %39 : vector<8x1xf32> to vector<8x8xf32>
    %41 = arith.mulf %36, %40 : vector<8x8xf32>
    %42 = vector.extract_strided_slice %9 {offsets = [0, 16], sizes = [8, 16], strides = [1, 1]} : vector<8x32xf32> to vector<8x16xf32>
    %cst_11 = arith.constant dense<0.000000e+00> : vector<8x16xf32>
    %43 = tpu.matmul %41, %42, %cst_11 {dimension_numbers = #tpu.dot_dimension_numbers<[1], [0], [0], [1], [0, 0, 1, 1], [], []>} : vector<8x8xf32>, vector<8x16xf32>, vector<8x16xf32> -> vector<8x16xf32>
    %44 = tpu.concatenate %26, %43 in 1 : vector<8x16xf32>, vector<8x16xf32> -> vector<8x32xf32>
    %c0_12 = arith.constant 0 : index
    %c0_13 = arith.constant 0 : index
    %45 = vector.load %arg4[%c0_12, %c0_13] : memref<32x32xf32, #tpu.memory_space<vmem>>, vector<32x32xf32>
    %cst_14 = arith.constant dense<0.000000e+00> : vector<8x32xf32>
    %46 = tpu.matmul %44, %45, %cst_14 {dimension_numbers = #tpu.dot_dimension_numbers<[1], [0], [0], [1], [0, 0, 1, 1], [], []>} : vector<8x32xf32>, vector<32x32xf32>, vector<8x32xf32> -> vector<8x32xf32>
    %c0_15 = arith.constant 0 : index
    %47 = arith.index_cast %4 : i32 to index
    %c0_16 = arith.constant 0 : index
    %48 = vector.load %arg2[%c0_15, %47, %c0_16] : memref<1x8x32xf32, #tpu.memory_space<vmem>>, vector<1x8x32xf32>
    %49 = vector.shape_cast %48 : vector<1x8x32xf32> to vector<8x32xf32>
    %50 = arith.addf %49, %46 : vector<8x32xf32>
    %cst_17 = arith.constant dense<0.000000e+00> : vector<8xf32>
    %51 = vector.multi_reduction <add>, %50, %cst_17 [1] : vector<8x32xf32> to vector<8xf32>
    %52 = vector.shape_cast %51 : vector<8xf32> to vector<8x1xf32>
    %cst_18 = arith.constant 3.200000e+01 : f32
    %53 = vector.broadcast %cst_18 : f32 to vector<8x1xf32>
    %54 = arith.divf %52, %53 : vector<8x1xf32>
    %55 = vector.broadcast %54 : vector<8x1xf32> to vector<8x32xf32>
    %56 = arith.subf %50, %55 : vector<8x32xf32>
    %57 = arith.mulf %56, %56 : vector<8x32xf32>
    %cst_19 = arith.constant dense<0.000000e+00> : vector<8xf32>
    %58 = vector.multi_reduction <add>, %57, %cst_19 [1] : vector<8x32xf32> to vector<8xf32>
    %59 = vector.shape_cast %58 : vector<8xf32> to vector<8x1xf32>
    %cst_20 = arith.constant 3.200000e+01 : f32
    %60 = vector.broadcast %cst_20 : f32 to vector<8x1xf32>
    %61 = arith.divf %59, %60 : vector<8x1xf32>
    %62 = vector.broadcast %54 : vector<8x1xf32> to vector<8x32xf32>
    %63 = arith.subf %50, %62 : vector<8x32xf32>
    %cst_21 = arith.constant 9.99999974E-6 : f32
    %64 = vector.broadcast %cst_21 : f32 to vector<8x1xf32>
    %65 = arith.addf %61, %64 : vector<8x1xf32>
    %66 = math.rsqrt %65 : vector<8x1xf32>
    %67 = vector.broadcast %66 : vector<8x1xf32> to vector<8x32xf32>
    %68 = arith.mulf %63, %67 : vector<8x32xf32>
    %c0_22 = arith.constant 0 : index
    %c0_23 = arith.constant 0 : index
    %69 = vector.load %arg5[%c0_22, %c0_23] : memref<1x32xf32, #tpu.memory_space<vmem>>, vector<1x32xf32>
    %70 = vector.broadcast %69 : vector<1x32xf32> to vector<8x32xf32>
    %71 = arith.mulf %68, %70 : vector<8x32xf32>
    %c0_24 = arith.constant 0 : index
    %c0_25 = arith.constant 0 : index
    %72 = vector.load %arg6[%c0_24, %c0_25] : memref<1x32xf32, #tpu.memory_space<vmem>>, vector<1x32xf32>
    %73 = vector.broadcast %72 : vector<1x32xf32> to vector<8x32xf32>
    %74 = arith.addf %71, %73 : vector<8x32xf32>
    %c0_26 = arith.constant 0 : index
    %c0_27 = arith.constant 0 : index
    %c0_28 = arith.constant 0 : index
    %75 = vector.load %arg7[%c0_26, %c0_27, %c0_28] : memref<1x8x32xf32, #tpu.memory_space<vmem>>, vector<1x8x32xf32>
    %76 = vector.shape_cast %75 : vector<1x8x32xf32> to vector<8x32xf32>
    %77 = vector.shape_cast %74 : vector<8x32xf32> to vector<1x8x32xf32>
    tpu.vector_store %arg7[%c0_26, %c0_27, %c0_28], %77 {strides = array<i32>} : memref<1x8x32xf32, #tpu.memory_space<vmem>>, vector<1x8x32xf32>,
    return
  }
  func.func @transform_0(%arg0: i32, %arg1: i32) -> (i32, i32, i32) {
    %c0_i32 = arith.constant 0 : i32
    %c0_i32_0 = arith.constant 0 : i32
    %c0_i32_1 = arith.constant 0 : i32
    return %arg0, %c0_i32, %c0_i32_0 : i32, i32, i32
  }
  func.func @transform_1(%arg0: i32, %arg1: i32) -> (i32, i32) {
    %c0_i32 = arith.constant 0 : i32
    %c0_i32_0 = arith.constant 0 : i32
    %c0_i32_1 = arith.constant 0 : i32
    return %c0_i32, %c0_i32_0 : i32, i32
  }
  func.func @transform_2(%arg0: i32, %arg1: i32) -> (i32, i32) {
    %c0_i32 = arith.constant 0 : i32
    %c0_i32_0 = arith.constant 0 : i32
    %c0_i32_1 = arith.constant 0 : i32
    return %c0_i32, %c0_i32_0 : i32, i32
  }
  func.func @transform_3(%arg0: i32, %arg1: i32) -> (i32, i32) {
    %c0_i32 = arith.constant 0 : i32
    %c0_i32_0 = arith.constant 0 : i32
    %c0_i32_1 = arith.constant 0 : i32
    return %c0_i32, %c0_i32_0 : i32, i32
  }
  func.func @transform_4(%arg0: i32, %arg1: i32) -> (i32, i32) {
    %c0_i32 = arith.constant 0 : i32
    %c0_i32_0 = arith.constant 0 : i32
    %c0_i32_1 = arith.constant 0 : i32
    return %c0_i32, %c0_i32_0 : i32, i32
  }
  func.func @transform_5(%arg0: i32, %arg1: i32) -> (i32, i32, i32) {
    %c0_i32 = arith.constant 0 : i32
    %c0_i32_0 = arith.constant 0 : i32
    return %arg0, %arg1, %c0_i32 : i32, i32, i32
  }
}

</mosaic_0001>

<llo_original>
// kernel: tpu_custom_call.1
$region0: #{tpu_custom_call.1}
  #allocation0 [shape = 'u32[]', space=smem, size = 0x4, offset = 0x4, fixed_abs, tag = 'smem constant byte address 0x4 - core index']
  #allocation1 [shape = 'u32[144,128]{1,0:T(1,128)}', space=vmem, size = 0x12000, scoped, tag = 'internal scratch']
  #allocation2 [shape = 'f32[8,96]{1,0:T(8,128)}', space=vmem, size = 0x1000, scoped, tag = 'scratch operand']
  %s0 = inlined_call_operand.hbm [shape: f32[2,8,32], index: 0, kind: input, shape index: {}]
  %s1 = inlined_call_operand.hbm [shape: f32[32,96], index: 1, kind: input, shape index: {}]
  %s2 = inlined_call_operand.hbm [shape: f32[32,32], index: 2, kind: input, shape index: {}]
  %s3 = inlined_call_operand.vmem [shape: f32[1,32], index: 3, kind: input, shape index: {}]
  %s4 = inlined_call_operand.vmem [shape: f32[1,32], index: 4, kind: input, shape index: {}]
  %s5 = inlined_call_operand.hbm [shape: f32[2,8,32], index: 5, kind: output, shape index: {}]
  %s6 = sld [smem:[#allocation0]]
  $region69: #{tpu_custom_call.1} parent=0
    _
  %s8 = ssub.s32 1, %s6
  %s9 = scalar_select 0, %s8, %s6
  $region1: #{tpu_custom_call.1} parent=0
    #allocation3 [shape = 'u8[8192]{0}', space=vmem, size = 0x2000, scoped, tag = 'input window, operand 0']
    #allocation4 [shape = 's32[2]{0}', space=sflag, size = 0x8, scoped, tag = 'scoped memory for tpu_custom_call.1']
    #allocation5 [shape = 's32[2]{0}', space=sflag, size = 0x8, scoped, tag = 'scoped memory for tpu_custom_call.1']
    #allocation6 [shape = 'u8[16384]{0}', space=vmem, size = 0x4000, scoped, tag = 'input window, operand 1, single buffered']
    #allocation7 [shape = 's32[1]{0}', space=sflag, size = 0x4, scoped, tag = 'scoped memory for tpu_custom_call.1']
    #allocation8 [shape = 'u8[16384]{0}', space=vmem, size = 0x4000, scoped, tag = 'input window, operand 2, single buffered']
    #allocation9 [shape = 'u8[8192]{0}', space=vmem, size = 0x2000, scoped, tag = 'output window, operand 0']
    %10 = vsyncpa [#allocation4], 0
    %s11 = scalar_lea.sflag [#allocation4], 1
    %12 = vsyncpa %s11, 0
    %13 = vsyncpa [#allocation7], 0
    %14 = vsyncpa [#allocation5], 0
    %s15 = scalar_lea.sflag [#allocation5], 1
    %16 = vsyncpa %s15, 0
    loop: start=0, step=1, limit=4
    $region2: #{tpu_custom_call.1} parent=1 // loop_pre_header
      _
    $region3: #{tpu_custom_call.1} parent=1 // loop_header
      %s18 = sphi 0, %s22
      %p19 = scmp.ge.s32.totalorder %s18, 4
      %s25 = sphi 0, %s37
      %s26 = sphi 0, %s33
      %s27 = sphi 0, %s25
      %s28 = sphi 0, %s26
      %s29 = sphi 0, %s27
      %s30 = sphi 0, %s28
      %s40 = sphi 0, %s42
      %s43 = sphi 0, %s40
      %s44 = sphi 0, %s43
      %s60 = sphi 0, %s44
      %s64 = sphi 0, %s64
      %s66 = sphi 0, %s64
      %s67 = sphi 0, %s66
      %s81 = sphi 0, %s67
      %s85 = sphi 0, %s85
      %s87 = sphi 0, %s85
      %s88 = sphi 0, %s87
      %s102 = sphi 0, %s88
      %s106 = sphi 0, %s106
      %s108 = sphi 0, %s106
      %s109 = sphi 0, %s108
      %s123 = sphi 0, %s109
      %s127 = sphi 0, %s127
      %s129 = sphi 0, %s127
      %s130 = sphi 0, %s129
      %s144 = sphi 0, %s130
      %s152 = sphi 0, %s154
      %s155 = sphi 0, %s152
      %s156 = sphi 0, %s155
      %s172 = sphi 0, %s156
    $region4: #{tpu_custom_call.1} parent=1 // loop_header_branch
      %21 = sbr.rel (%p19) target = $region8
    $region5: #{tpu_custom_call.1} parent=1 // loop_body
      %s23 = ssub.s32 %s18, 1
      %s24 = ssub.s32 %s18, 2
      %s31 = sadd.s32 1, %s26
      %p32 = scmp.ge.s32.totalorder %s31, 1
      %s33 = scalar_select %p32, 0, %s31
      %s34 = sadd.s32 1, %s25
      %s35 = scalar_select %p32, %s34, %s25
      %p36 = scmp.ge.s32.totalorder %s35, 2
      %s37 = scalar_select %p36, 0, %s35
      %s38 = ssub.s32 %s25, %s37
      %p39 = scmp.eq.s32.totalorder %s38, 0
      %s41 = sadd.s32 %s40, 1
      %s42 = scalar_select %p39, %s40, %s41
      %p45 = pneg %p39
      %p46 = scmp.eq.s32.totalorder %s18, 1
      %p47 = por %p45, %p46
      %p48 = scmp.ne.s32.totalorder %s40, %s43
      %p49 = scmp.eq.s32.totalorder %s18, 0
      %p50 = por %p48, %p49
      %p51 = scmp.ne.s32.totalorder %s40, %s43
      %p52 = scmp.eq.s32.totalorder %s23, 1
      %p53 = por %p51, %p52
      %p54 = scmp.ne.s32.totalorder %s43, %s44
      %p55 = scmp.eq.s32.totalorder %s23, 0
      %p56 = por %p54, %p55
      %p57 = scmp.ne.s32.totalorder %s43, %s44
      %p58 = scmp.eq.s32.totalorder %s24, 1
      %p59 = por %p57, %p58
      %p61 = scmp.ne.s32.totalorder %s44, %s60
      %p62 = scmp.eq.s32.totalorder %s24, 0
      %p63 = por %p61, %p62
      %s65 = sadd.s32 %s64, 1
      %p68 = scmp.eq.s32.totalorder %s18, 1
      %p69 = scmp.ne.s32.totalorder %s64, %s66
      %p70 = scmp.eq.s32.totalorder %s18, 0
      %p71 = por %p69, %p70
      %p72 = scmp.ne.s32.totalorder %s64, %s66
      %p73 = scmp.eq.s32.totalorder %s23, 1
      %p74 = por %p72, %p73
      %p75 = scmp.ne.s32.totalorder %s66, %s67
      %p76 = scmp.eq.s32.totalorder %s23, 0
      %p77 = por %p75, %p76
      %p78 = scmp.ne.s32.totalorder %s66, %s67
      %p79 = scmp.eq.s32.totalorder %s24, 1
      %p80 = por %p78, %p79
      %p82 = scmp.ne.s32.totalorder %s67, %s81
      %p83 = scmp.eq.s32.totalorder %s24, 0
      %p84 = por %p82, %p83
      %s86 = sadd.s32 %s85, 1
      %p89 = scmp.eq.s32.totalorder %s18, 1
      %p90 = scmp.ne.s32.totalorder %s85, %s87
      %p91 = scmp.eq.s32.totalorder %s18, 0
      %p92 = por %p90, %p91
      %p93 = scmp.ne.s32.totalorder %s85, %s87
      %p94 = scmp.eq.s32.totalorder %s23, 1
      %p95 = por %p93, %p94
      %p96 = scmp.ne.s32.totalorder %s87, %s88
      %p97 = scmp.eq.s32.totalorder %s23, 0
      %p98 = por %p96, %p97
      %p99 = scmp.ne.s32.totalorder %s87, %s88
      %p100 = scmp.eq.s32.totalorder %s24, 1
      %p101 = por %p99, %p100
      %p103 = scmp.ne.s32.totalorder %s88, %s102
      %p104 = scmp.eq.s32.totalorder %s24, 0
      %p105 = por %p103, %p104
      %s107 = sadd.s32 %s106, 1
      %p110 = scmp.eq.s32.totalorder %s18, 1
      %p111 = scmp.ne.s32.totalorder %s106, %s108
      %p112 = scmp.eq.s32.totalorder %s18, 0
      %p113 = por %p111, %p112
      %p114 = scmp.ne.s32.totalorder %s106, %s108
      %p115 = scmp.eq.s32.totalorder %s23, 1
      %p116 = por %p114, %p115
      %p117 = scmp.ne.s32.totalorder %s108, %s109
      %p118 = scmp.eq.s32.totalorder %s23, 0
      %p119 = por %p117, %p118
      %p120 = scmp.ne.s32.totalorder %s108, %s109
      %p121 = scmp.eq.s32.totalorder %s24, 1
      %p122 = por %p120, %p121
      %p124 = scmp.ne.s32.totalorder %s109, %s123
      %p125 = scmp.eq.s32.totalorder %s24, 0
      %p126 = por %p124, %p125
      %s128 = sadd.s32 %s127, 1
      %p131 = scmp.eq.s32.totalorder %s18, 1
      %p132 = scmp.ne.s32.totalorder %s127, %s129
      %p133 = scmp.eq.s32.totalorder %s18, 0
      %p134 = por %p132, %p133
      %p135 = scmp.ne.s32.totalorder %s127, %s129
      %p136 = scmp.eq.s32.totalorder %s23, 1
      %p137 = por %p135, %p136
      %p138 = scmp.ne.s32.totalorder %s129, %s130
      %p139 = scmp.eq.s32.totalorder %s23, 0
      %p140 = por %p138, %p139
      %p141 = scmp.ne.s32.totalorder %s129, %s130
      %p142 = scmp.eq.s32.totalorder %s24, 1
      %p143 = por %p141, %p142
      %p145 = scmp.ne.s32.totalorder %s130, %s144
      %p146 = scmp.eq.s32.totalorder %s24, 0
      %p147 = por %p145, %p146
      %s148 = ssub.s32 %s25, %s37
      %s149 = ssub.s32 %s26, %s33
      %s150 = sor.u32 %s148, %s149
      %p151 = scmp.eq.s32.totalorder %s150, 0
      %s153 = sadd.s32 %s152, 1
      %s154 = scalar_select %p151, %s152, %s153
      %p157 = pneg %p151
      %p158 = scmp.eq.s32.totalorder %s18, 1
      %p159 = por %p157, %p158
      %p160 = scmp.ne.s32.totalorder %s152, %s155
      %p161 = scmp.eq.s32.totalorder %s18, 0
      %p162 = por %p160, %p161
      %p163 = scmp.ne.s32.totalorder %s152, %s155
      %p164 = scmp.eq.s32.totalorder %s23, 1
      %p165 = por %p163, %p164
      %p166 = scmp.ne.s32.totalorder %s155, %s156
      %p167 = scmp.eq.s32.totalorder %s23, 0
      %p168 = por %p166, %p167
      %p169 = scmp.ne.s32.totalorder %s155, %s156
      %p170 = scmp.eq.s32.totalorder %s24, 1
      %p171 = por %p169, %p170
      %p173 = scmp.ne.s32.totalorder %s156, %s172
      %p174 = scmp.eq.s32.totalorder %s24, 0
      %p175 = por %p173, %p174
      %p176 = scmp.le.s32.totalorder 1, %s18
      %p177 = scmp.lt.s32.totalorder %s18, 3
      %p178 = pnand %p176, %p177
      %p179 = pneg %p178
      // Predicated region
      $region9: #{tpu_custom_call.1} parent=5 // pred_check
        _
      $region10: #{tpu_custom_call.1} parent=5 // pred_check_branch
        %181 = sbr.rel (%p178) target = $region12
      $region11: #{tpu_custom_call.1} parent=5 // pred_region
        %s182 = ssub.s32 %s18, 1
        // Predicated region
        $region13: #{tpu_custom_call.1} parent=11 // pred_check
          %p183 = pneg %p77
        $region14: #{tpu_custom_call.1} parent=11 // pred_check_branch
          %185 = sbr.rel (%p183) target = $region16
        $region15: #{tpu_custom_call.1} parent=11 // pred_region
          %s187 = ssub.s32 512, 512
          %188 = vsyncadd [#allocation7], %s187
          %s189 = sshll.u32 [#allocation6], 4
          %s190 = int_to_ptr.vmem [resolvable:$true] %s189
          %195 = dma.hbm_to_vmem [thread:$0]  %s1, 512, %s190, [#allocation7], 128, 128, 8
        $region16: #{tpu_custom_call.1} parent=11 // pred_fallthru
          _
        // Predicated region
        $region17: #{tpu_custom_call.1} parent=11 // pred_check
          %p196 = pneg %p98
        $region18: #{tpu_custom_call.1} parent=11 // pred_check_branch
          %198 = sbr.rel (%p196) target = $region20
        $region19: #{tpu_custom_call.1} parent=11 // pred_region
          %s200 = ssub.s32 512, 512
          %201 = vsyncadd [#allocation7], %s200
          %s202 = sshll.u32 [#allocation8], 4
          %s203 = int_to_ptr.vmem [resolvable:$true] %s202
          %208 = dma.hbm_to_vmem [thread:$0]  %s2, 512, %s203, [#allocation7], 128, 128, 8
        $region20: #{tpu_custom_call.1} parent=11 // pred_fallthru
          _
        // Predicated region
        $region21: #{tpu_custom_call.1} parent=11 // pred_check
          %p209 = pneg %p119
        $region22: #{tpu_custom_call.1} parent=11 // pred_check_branch
          %211 = sbr.rel (%p209) target = $region24
        $region23: #{tpu_custom_call.1} parent=11 // pred_region
          _
        $region24: #{tpu_custom_call.1} parent=11 // pred_fallthru
          _
        // Predicated region
        $region25: #{tpu_custom_call.1} parent=11 // pred_check
          %p212 = pneg %p140
        $region26: #{tpu_custom_call.1} parent=11 // pred_check_branch
          %214 = sbr.rel (%p212) target = $region28
        $region27: #{tpu_custom_call.1} parent=11 // pred_region
          _
        $region28: #{tpu_custom_call.1} parent=11 // pred_fallthru
          _
      $region12: #{tpu_custom_call.1} parent=5 // pred_fallthru
        _
      %p215 = scmp.lt.s32.totalorder %s18, 2
      // Predicated region
      $region29: #{tpu_custom_call.1} parent=5 // pred_check
        %p216 = pneg %p215
      $region30: #{tpu_custom_call.1} parent=5 // pred_check_branch
        %218 = sbr.rel (%p216) target = $region32
      $region31: #{tpu_custom_call.1} parent=5 // pred_region
        // Predicated region
        $region33: #{tpu_custom_call.1} parent=31 // pred_check
          %p219 = pneg %p50
        $region34: #{tpu_custom_call.1} parent=31 // pred_check_branch
          %221 = sbr.rel (%p219) target = $region36
        $region35: #{tpu_custom_call.1} parent=31 // pred_region
          %s222 = sand.u32 %s40, 1
          %s223 = scalar_lea.sflag [#allocation4], %s222
          %s224 = sand.u32 %s40, 1
          %s225 = smul.addr %s224, 8
          %s226 = scalar_lea.vmem [#allocation3], %s225
          %s228 = ssub.s32 128, 128
          %229 = vsyncadd %s223, %s228
          %s230 = smul.addr %s25, 128
          %s231 = scalar_lea.hbm %s0, %s230
          %s233 = sshll.u32 %s226, 4
          %s234 = int_to_ptr.vmem [resolvable:$true] %s233
          %236 = dma.hbm_to_vmem [thread:$0]  %s231, 128, %s234, %s223
        $region36: #{tpu_custom_call.1} parent=31 // pred_fallthru
          _
      $region32: #{tpu_custom_call.1} parent=5 // pred_fallthru
        _
      %p237 = scmp.le.s32.totalorder 1, %s18
      %p238 = scmp.lt.s32.totalorder %s18, 3
      %p239 = pnand %p237, %p238
      %p240 = pneg %p239
      // Predicated region
      $region37: #{tpu_custom_call.1} parent=5 // pred_check
        _
      $region38: #{tpu_custom_call.1} parent=5 // pred_check_branch
        %242 = sbr.rel (%p239) target = $region40
      $region39: #{tpu_custom_call.1} parent=5 // pred_region
        %s243 = ssub.s32 %s18, 1
        %s244 = sand.u32 %s43, 1
        %s245 = scalar_lea.sflag [#allocation4], %s244
        %s246 = sand.u32 %s43, 1
        %s247 = smul.addr %s246, 8
        %s248 = scalar_lea.vmem [#allocation3], %s247
        // Predicated region
        $region41: #{tpu_custom_call.1} parent=39 // pred_check
          %p249 = pneg %p56
        $region42: #{tpu_custom_call.1} parent=39 // pred_check_branch
          %251 = sbr.rel (%p249) target = $region44
        $region43: #{tpu_custom_call.1} parent=39 // pred_region
          %252 = dma.done %s245, 128
        $region44: #{tpu_custom_call.1} parent=39 // pred_fallthru
          _
        // Predicated region
        $region45: #{tpu_custom_call.1} parent=39 // pred_check
          %p253 = pneg %p77
        $region46: #{tpu_custom_call.1} parent=39 // pred_check_branch
          %255 = sbr.rel (%p253) target = $region48
        $region47: #{tpu_custom_call.1} parent=39 // pred_region
          %256 = dma.done [#allocation7], 512
        $region48: #{tpu_custom_call.1} parent=39 // pred_fallthru
          _
        // Predicated region
        $region49: #{tpu_custom_call.1} parent=39 // pred_check
          %p257 = pneg %p98
        $region50: #{tpu_custom_call.1} parent=39 // pred_check_branch
          %259 = sbr.rel (%p257) target = $region52
        $region51: #{tpu_custom_call.1} parent=39 // pred_region
          %260 = dma.done [#allocation7], 512
        $region52: #{tpu_custom_call.1} parent=39 // pred_fallthru
          _
        %s261 = sand.u32 %s43, 1
        %s262 = scalar_lea.sflag [#allocation4], %s261
        %s263 = sand.u32 %s43, 1
        %s264 = smul.addr %s263, 8
        %s265 = scalar_lea.vmem [#allocation3], %s264
        %p266 = pneg %p56
        %p267 = pneg %p53
        %p268 = pneg %p77
        %p269 = pneg %p74
        %p270 = pneg %p98
        %p271 = pneg %p95
        %p272 = pneg %p119
        %p273 = pneg %p116
        %p274 = pneg %p140
        %p275 = pneg %p137
        %p276 = pneg %p168
        %p277 = pneg %p165
        %s278 = sand.u32 %s155, 1
        %s279 = scalar_lea.sflag [#allocation5], %s278
        %s280 = sand.u32 %s155, 1
        %s281 = smul.addr %s280, 8
        %s282 = scalar_lea.vmem [#allocation9], %s281
        %p283 = scmp.eq.s32.totalorder %s28, 0
        // Predicated region
        $region53: #{tpu_custom_call.1} parent=39 // pred_check
          %p284 = pneg %p283
        $region54: #{tpu_custom_call.1} parent=39 // pred_check_branch
          %286 = sbr.rel (%p284) target = $region56
        $region55: #{tpu_custom_call.1} parent=39 // pred_region
          %v287 = vld [vmem:[%s248] sm:$0xff]
          %v288 = vld [vmem:[#allocation6] sm:$0xff]
          %v289 = vld [vmem:[#allocation6 + $0x8] sm:$0xff]
          %v290 = vld [vmem:[#allocation6 + $0x10] sm:$0xff]
          %v291 = vld [vmem:[#allocation6 + $0x18] sm:$0xff]
          %vm292 = vcmask 261120
          %v294 = vsel %vm292, %v287, 0
          %296 = vmatprep.subr.mxu0 0.0
          %297 = vmatpush1.msra.mxu0 %v288
          %298 = vmatprep.subr.mxu0 0.0
          %299 = vmatpush1.msra.mxu0 %v289
          %300 = vmatprep.subr.mxu0 0.0
          %301 = vmatpush1.msra.mxu0 %v290
          %302 = vmatprep.subr.mxu0 0.0
          %303 = vmatpush1.msra.mxu0 %v291
          %304 = vmatprep.subr.mxu0 0.0
          %305 = vmatpush1.msra.mxu0 0.0
          %306 = vmatprep.subr.mxu0 0.0
          %307 = vmatpush1.msra.mxu0 0.0
          %308 = vmatprep.subr.mxu0 0.0
          %309 = vmatpush1.msra.mxu0 0.0
          %310 = vmatprep.subr.mxu0 0.0
          %311 = vmatpush1.msra.mxu0 0.0
          %312 = vmatprep.subr.mxu0 0.0
          %313 = vmatpush1.msra.mxu0 0.0
          %314 = vmatprep.subr.mxu0 0.0
          %315 = vmatpush1.msra.mxu0 0.0
          %316 = vmatprep.subr.mxu0 0.0
          %317 = vmatpush1.msra.mxu0 0.0
          %318 = vmatprep.subr.mxu0 0.0
          %319 = vmatpush1.msra.mxu0 0.0
          %320 = vmatprep.subr.mxu0 0.0
          %321 = vmatpush1.msra.mxu0 0.0
          %322 = vmatprep.subr.mxu0 0.0
          %323 = vmatpush1.msra.mxu0 0.0
          %324 = vmatprep.subr.mxu0 0.0
          %325 = vmatpush1.msra.mxu0 0.0
          %326 = vmatprep.subr.mxu0 0.0
          %327 = vmatpush1.msra.mxu0 0.0
          %328 = vmatprep.subr.mxu0 0.0
          %329 = vmatpush1.msra.mxu0 0.0
          %330 = vmatprep.subr.mxu0 0.0
          %331 = vmatpush1.msra.mxu0 0.0
          %332 = vmatprep.subr.mxu0 0.0
          %333 = vmatpush1.msra.mxu0 0.0
          %334 = vmatprep.subr.mxu0 0.0
          %335 = vmatpush1.msra.mxu0 0.0
          %336 = vmatprep.subr.mxu0 0.0
          %337 = vmatpush1.msra.mxu0 0.0
          %338 = vmatprep.subr.mxu0 0.0
          %339 = vmatpush1.msra.mxu0 0.0
          %340 = vmatprep.subr.mxu0 0.0
          %341 = vmatpush1.msra.mxu0 0.0
          %342 = vmatprep.subr.mxu0 0.0
          %343 = vmatpush1.msra.mxu0 0.0
          %344 = vmatprep.subr.mxu0 0.0
          %345 = vmatpush1.msra.mxu0 0.0
          %346 = vmatprep.subr.mxu0 0.0
          %347 = vmatpush1.msra.mxu0 0.0
          %348 = vmatprep.subr.mxu0 0.0
          %349 = vmatpush1.msra.mxu0 0.0
          %350 = vmatprep.subr.mxu0 0.0
          %351 = vmatpush1.msra.mxu0 0.0
          %352 = vmatprep.subr.mxu0 0.0
          %353 = vmatpush1.msra.mxu0 0.0
          %354 = vmatprep.subr.mxu0 0.0
          %355 = vmatpush1.msra.mxu0 0.0
          %356 = vmatprep.subr.mxu0 0.0
          %357 = vmatpush1.msra.mxu0 0.0
          %358 = vmatprep.subr.mxu0 0.0
          %359 = vmatpush1.msra.mxu0 0.0
          %360 = vmatprep.mubr.f32.mxu0 0.0
          %361 = vmatmul.mubr.f32.gmra.mrb[0].mxu0 %v294
          %v362 = vpop.f32.mrb[0].mxu0
          %v363 = vadd.f32 0.0, %v362
          %v364 = vpop.f32.mrb[0].mxu0
          %365 = vdwg.mxu0
          %vm366 = vcmask 785408
          %367 = vst.msk [vmem:[#allocation2] sm:$0xff] %vm366, %v363
        $region56: #{tpu_custom_call.1} parent=39 // pred_fallthru
          _
        %s368 = smul.u32 %s28, 8
        %s369 = scalar_lea.vmem [#allocation2], %s368
        %v370 = vld [vmem:[%s369] sm:$0xff]
        %v371 = vld [vmem:[#allocation2] sm:$0xff]
        %373 = vrot.lane.b32.xlu0 %v371, 96
        %v374 = vpop.permute.xlu0 %373
        %vm375 = vcmask 130048
        %v377 = vsel %vm375, %v370, 0
        %v379 = vsel %vm375, %v374, 0
        %381 = vmatprep.subr.mxu0 0.0
        %382 = vmatpush1.xpose.msra.mxu0 %v379
        %383 = vmatprep.subr.mxu0 0.0
        %384 = vmatpush1.xpose.msra.mxu0 0.0
        %385 = vmatprep.subr.mxu0 0.0
        %386 = vmatpush1.xpose.msra.mxu0 0.0
        %387 = vmatprep.subr.mxu0 0.0
        %388 = vmatpush1.xpose.msra.mxu0 0.0
        %389 = vmatprep.subr.mxu0 0.0
        %390 = vmatpush1.xpose.msra.mxu0 0.0
        %391 = vmatprep.subr.mxu0 0.0
        %392 = vmatpush1.xpose.msra.mxu0 0.0
        %393 = vmatprep.subr.mxu0 0.0
        %394 = vmatpush1.xpose.msra.mxu0 0.0
        %395 = vmatprep.subr.mxu0 0.0
        %396 = vmatpush1.xpose.msra.mxu0 0.0
        %397 = vmatprep.subr.mxu0 0.0
        %398 = vmatpush1.xpose.msra.mxu0 0.0
        %399 = vmatprep.subr.mxu0 0.0
        %400 = vmatpush1.xpose.msra.mxu0 0.0
        %401 = vmatprep.subr.mxu0 0.0
        %402 = vmatpush1.xpose.msra.mxu0 0.0
        %403 = vmatprep.subr.mxu0 0.0
        %404 = vmatpush1.xpose.msra.mxu0 0.0
        %405 = vmatprep.subr.mxu0 0.0
        %406 = vmatpush1.xpose.msra.mxu0 0.0
        %407 = vmatprep.subr.mxu0 0.0
        %408 = vmatpush1.xpose.msra.mxu0 0.0
        %409 = vmatprep.subr.mxu0 0.0
        %410 = vmatpush1.xpose.msra.mxu0 0.0
        %411 = vmatprep.subr.mxu0 0.0
        %412 = vmatpush1.xpose.msra.mxu0 0.0
        %413 = vmatprep.subr.mxu0 0.0
        %414 = vmatpush1.xpose.msra.mxu0 0.0
        %415 = vmatprep.subr.mxu0 0.0
        %416 = vmatpush1.xpose.msra.mxu0 0.0
        %417 = vmatprep.subr.mxu0 0.0
        %418 = vmatpush1.xpose.msra.mxu0 0.0
        %419 = vmatprep.subr.mxu0 0.0
        %420 = vmatpush1.xpose.msra.mxu0 0.0
        %421 = vmatprep.subr.mxu0 0.0
        %422 = vmatpush1.xpose.msra.mxu0 0.0
        %423 = vmatprep.subr.mxu0 0.0
        %424 = vmatpush1.xpose.msra.mxu0 0.0
        %425 = vmatprep.subr.mxu0 0.0
        %426 = vmatpush1.xpose.msra.mxu0 0.0
        %427 = vmatprep.subr.mxu0 0.0
        %428 = vmatpush1.xpose.msra.mxu0 0.0
        %429 = vmatprep.subr.mxu0 0.0
        %430 = vmatpush1.xpose.msra.mxu0 0.0
        %431 = vmatprep.subr.mxu0 0.0
        %432 = vmatpush1.xpose.msra.mxu0 0.0
        %433 = vmatprep.subr.mxu0 0.0
        %434 = vmatpush1.xpose.msra.mxu0 0.0
        %435 = vmatprep.subr.mxu0 0.0
        %436 = vmatpush1.xpose.msra.mxu0 0.0
        %437 = vmatprep.subr.mxu0 0.0
        %438 = vmatpush1.xpose.msra.mxu0 0.0
        %439 = vmatprep.subr.mxu0 0.0
        %440 = vmatpush1.xpose.msra.mxu0 0.0
        %441 = vmatprep.subr.mxu0 0.0
        %442 = vmatpush1.xpose.msra.mxu0 0.0
        %443 = vmatprep.subr.mxu0 0.0
        %444 = vmatpush1.xpose.msra.mxu0 0.0
        %445 = vmatprep.mubr.f32.mxu0 0.0
        %446 = vmatmul.mubr.f32.gmra.mrb[0].mxu0 %v377
        %v447 = vpop.f32.mrb[0].mxu0
        %v448 = vadd.f32 0.0, %v447
        %v449 = vpop.f32.mrb[0].mxu0
        %450 = vdwg.mxu0
        %v451 = vmul.f32 %v448, 0.25
        %vm452 = vcmask 64512
        %v453 = vsel %vm452, %v451, -inf
        %454 = vmax.xlane.f32.xlu0 %v453
        %v455 = vpop.xlane.xlu0 %454
        %v456 = vsub.f32 %v451, %v455
        %v457 = vmul.f32 %v456, 1.442695
        %v458 = vpow.pop %v457
        %v459 = vsel %vm452, %v458, 0.0
        %460 = vadd.xlane.f32.xlu0 %v459
        %v461 = vpop.xlane.xlu0 %460
        %v462 = vrcp.pop %v461
        %v463 = vmul.f32 %v458, %v462
        %464 = vrot.lane.b32.xlu0 %v371, 64
        %v465 = vpop.permute.xlu0 %464
        %v468 = vsel %vm452, %v463, 0
        %470 = vmatprep.subr.mxu0 0.0
        %471 = vmatpush1.msra.mxu0 %v465
        %472 = vmatprep.subr.mxu0 0.0
        %473 = vmatpush1.msra.mxu0 0.0
        %474 = vmatprep.subr.mxu0 0.0
        %475 = vmatpush1.msra.mxu0 0.0
        %476 = vmatprep.subr.mxu0 0.0
        %477 = vmatpush1.msra.mxu0 0.0
        %478 = vmatprep.subr.mxu0 0.0
        %479 = vmatpush1.msra.mxu0 0.0
        %480 = vmatprep.subr.mxu0 0.0
        %481 = vmatpush1.msra.mxu0 0.0
        %482 = vmatprep.subr.mxu0 0.0
        %483 = vmatpush1.msra.mxu0 0.0
        %484 = vmatprep.subr.mxu0 0.0
        %485 = vmatpush1.msra.mxu0 0.0
        %486 = vmatprep.subr.mxu0 0.0
        %487 = vmatpush1.msra.mxu0 0.0
        %488 = vmatprep.subr.mxu0 0.0
        %489 = vmatpush1.msra.mxu0 0.0
        %490 = vmatprep.subr.mxu0 0.0
        %491 = vmatpush1.msra.mxu0 0.0
        %492 = vmatprep.subr.mxu0 0.0
        %493 = vmatpush1.msra.mxu0 0.0
        %494 = vmatprep.subr.mxu0 0.0
        %495 = vmatpush1.msra.mxu0 0.0
        %496 = vmatprep.subr.mxu0 0.0
        %497 = vmatpush1.msra.mxu0 0.0
        %498 = vmatprep.subr.mxu0 0.0
        %499 = vmatpush1.msra.mxu0 0.0
        %500 = vmatprep.subr.mxu0 0.0
        %501 = vmatpush1.msra.mxu0 0.0
        %502 = vmatprep.subr.mxu0 0.0
        %503 = vmatpush1.msra.mxu0 0.0
        %504 = vmatprep.subr.mxu0 0.0
        %505 = vmatpush1.msra.mxu0 0.0
        %506 = vmatprep.subr.mxu0 0.0
        %507 = vmatpush1.msra.mxu0 0.0
        %508 = vmatprep.subr.mxu0 0.0
        %509 = vmatpush1.msra.mxu0 0.0
        %510 = vmatprep.subr.mxu0 0.0
        %511 = vmatpush1.msra.mxu0 0.0
        %512 = vmatprep.subr.mxu0 0.0
        %513 = vmatpush1.msra.mxu0 0.0
        %514 = vmatprep.subr.mxu0 0.0
        %515 = vmatpush1.msra.mxu0 0.0
        %516 = vmatprep.subr.mxu0 0.0
        %517 = vmatpush1.msra.mxu0 0.0
        %518 = vmatprep.subr.mxu0 0.0
        %519 = vmatpush1.msra.mxu0 0.0
        %520 = vmatprep.subr.mxu0 0.0
        %521 = vmatpush1.msra.mxu0 0.0
        %522 = vmatprep.subr.mxu0 0.0
        %523 = vmatpush1.msra.mxu0 0.0
        %524 = vmatprep.subr.mxu0 0.0
        %525 = vmatpush1.msra.mxu0 0.0
        %526 = vmatprep.subr.mxu0 0.0
        %527 = vmatpush1.msra.mxu0 0.0
        %528 = vmatprep.subr.mxu0 0.0
        %529 = vmatpush1.msra.mxu0 0.0
        %530 = vmatprep.subr.mxu0 0.0
        %531 = vmatpush1.msra.mxu0 0.0
        %532 = vmatprep.subr.mxu0 0.0
        %533 = vmatpush1.msra.mxu0 0.0
        %534 = vmatprep.mubr.f32.mxu0 0.0
        %535 = vmatmul.mubr.f32.gmra.mrb[0].mxu0 %v468
        %v536 = vpop.f32.mrb[0].mxu0
        %v537 = vadd.f32 0.0, %v536
        %v538 = vpop.f32.mrb[0].mxu0
        %539 = vdwg.mxu0
        %540 = vrot.lane.b32.xlu0 %v370, 112
        %v541 = vpop.permute.xlu0 %540
        %542 = vrot.lane.b32.xlu0 %v371, 80
        %v543 = vpop.permute.xlu0 %542
        %v544 = vsel %vm375, %v541, 0
        %v546 = vsel %vm375, %v543, 0
        %548 = vmatprep.subr.mxu0 0.0
        %549 = vmatpush1.xpose.msra.mxu0 %v546
        %550 = vmatprep.subr.mxu0 0.0
        %551 = vmatpush1.xpose.msra.mxu0 0.0
        %552 = vmatprep.subr.mxu0 0.0
        %553 = vmatpush1.xpose.msra.mxu0 0.0
        %554 = vmatprep.subr.mxu0 0.0
        %555 = vmatpush1.xpose.msra.mxu0 0.0
        %556 = vmatprep.subr.mxu0 0.0
        %557 = vmatpush1.xpose.msra.mxu0 0.0
        %558 = vmatprep.subr.mxu0 0.0
        %559 = vmatpush1.xpose.msra.mxu0 0.0
        %560 = vmatprep.subr.mxu0 0.0
        %561 = vmatpush1.xpose.msra.mxu0 0.0
        %562 = vmatprep.subr.mxu0 0.0
        %563 = vmatpush1.xpose.msra.mxu0 0.0
        %564 = vmatprep.subr.mxu0 0.0
        %565 = vmatpush1.xpose.msra.mxu0 0.0
        %566 = vmatprep.subr.mxu0 0.0
        %567 = vmatpush1.xpose.msra.mxu0 0.0
        %568 = vmatprep.subr.mxu0 0.0
        %569 = vmatpush1.xpose.msra.mxu0 0.0
        %570 = vmatprep.subr.mxu0 0.0
        %571 = vmatpush1.xpose.msra.mxu0 0.0
        %572 = vmatprep.subr.mxu0 0.0
        %573 = vmatpush1.xpose.msra.mxu0 0.0
        %574 = vmatprep.subr.mxu0 0.0
        %575 = vmatpush1.xpose.msra.mxu0 0.0
        %576 = vmatprep.subr.mxu0 0.0
        %577 = vmatpush1.xpose.msra.mxu0 0.0
        %578 = vmatprep.subr.mxu0 0.0
        %579 = vmatpush1.xpose.msra.mxu0 0.0
        %580 = vmatprep.subr.mxu0 0.0
        %581 = vmatpush1.xpose.msra.mxu0 0.0
        %582 = vmatprep.subr.mxu0 0.0
        %583 = vmatpush1.xpose.msra.mxu0 0.0
        %584 = vmatprep.subr.mxu0 0.0
        %585 = vmatpush1.xpose.msra.mxu0 0.0
        %586 = vmatprep.subr.mxu0 0.0
        %587 = vmatpush1.xpose.msra.mxu0 0.0
        %588 = vmatprep.subr.mxu0 0.0
        %589 = vmatpush1.xpose.msra.mxu0 0.0
        %590 = vmatprep.subr.mxu0 0.0
        %591 = vmatpush1.xpose.msra.mxu0 0.0
        %592 = vmatprep.subr.mxu0 0.0
        %593 = vmatpush1.xpose.msra.mxu0 0.0
        %594 = vmatprep.subr.mxu0 0.0
        %595 = vmatpush1.xpose.msra.mxu0 0.0
        %596 = vmatprep.subr.mxu0 0.0
        %597 = vmatpush1.xpose.msra.mxu0 0.0
        %598 = vmatprep.subr.mxu0 0.0
        %599 = vmatpush1.xpose.msra.mxu0 0.0
        %600 = vmatprep.subr.mxu0 0.0
        %601 = vmatpush1.xpose.msra.mxu0 0.0
        %602 = vmatprep.subr.mxu0 0.0
        %603 = vmatpush1.xpose.msra.mxu0 0.0
        %604 = vmatprep.subr.mxu0 0.0
        %605 = vmatpush1.xpose.msra.mxu0 0.0
        %606 = vmatprep.subr.mxu0 0.0
        %607 = vmatpush1.xpose.msra.mxu0 0.0
        %608 = vmatprep.subr.mxu0 0.0
        %609 = vmatpush1.xpose.msra.mxu0 0.0
        %610 = vmatprep.subr.mxu0 0.0
        %611 = vmatpush1.xpose.msra.mxu0 0.0
        %612 = vmatprep.mubr.f32.mxu0 0.0
        %613 = vmatmul.mubr.f32.gmra.mrb[0].mxu0 %v544
        %v614 = vpop.f32.mrb[0].mxu0
        %v615 = vadd.f32 0.0, %v614
        %v616 = vpop.f32.mrb[0].mxu0
        %617 = vdwg.mxu0
        %v618 = vmul.f32 %v615, 0.25
        %v619 = vsel %vm452, %v618, -inf
        %620 = vmax.xlane.f32.xlu0 %v619
        %v621 = vpop.xlane.xlu0 %620
        %v622 = vsub.f32 %v618, %v621
        %v623 = vmul.f32 %v622, 1.442695
        %v624 = vpow.pop %v623
        %v625 = vsel %vm452, %v624, 0.0
        %626 = vadd.xlane.f32.xlu0 %v625
        %v627 = vpop.xlane.xlu0 %626
        %v628 = vrcp.pop %v627
        %v629 = vmul.f32 %v624, %v628
        %630 = vrot.lane.b32.xlu0 %v371, 48
        %v631 = vpop.permute.xlu0 %630
        %v634 = vsel %vm452, %v629, 0
        %636 = vmatprep.subr.mxu0 0.0
        %637 = vmatpush1.msra.mxu0 %v631
        %638 = vmatprep.subr.mxu0 0.0
        %639 = vmatpush1.msra.mxu0 0.0
        %640 = vmatprep.subr.mxu0 0.0
        %641 = vmatpush1.msra.mxu0 0.0
        %642 = vmatprep.subr.mxu0 0.0
        %643 = vmatpush1.msra.mxu0 0.0
        %644 = vmatprep.subr.mxu0 0.0
        %645 = vmatpush1.msra.mxu0 0.0
        %646 = vmatprep.subr.mxu0 0.0
        %647 = vmatpush1.msra.mxu0 0.0
        %648 = vmatprep.subr.mxu0 0.0
        %649 = vmatpush1.msra.mxu0 0.0
        %650 = vmatprep.subr.mxu0 0.0
        %651 = vmatpush1.msra.mxu0 0.0
        %652 = vmatprep.subr.mxu0 0.0
        %653 = vmatpush1.msra.mxu0 0.0
        %654 = vmatprep.subr.mxu0 0.0
        %655 = vmatpush1.msra.mxu0 0.0
        %656 = vmatprep.subr.mxu0 0.0
        %657 = vmatpush1.msra.mxu0 0.0
        %658 = vmatprep.subr.mxu0 0.0
        %659 = vmatpush1.msra.mxu0 0.0
        %660 = vmatprep.subr.mxu0 0.0
        %661 = vmatpush1.msra.mxu0 0.0
        %662 = vmatprep.subr.mxu0 0.0
        %663 = vmatpush1.msra.mxu0 0.0
        %664 = vmatprep.subr.mxu0 0.0
        %665 = vmatpush1.msra.mxu0 0.0
        %666 = vmatprep.subr.mxu0 0.0
        %667 = vmatpush1.msra.mxu0 0.0
        %668 = vmatprep.subr.mxu0 0.0
        %669 = vmatpush1.msra.mxu0 0.0
        %670 = vmatprep.subr.mxu0 0.0
        %671 = vmatpush1.msra.mxu0 0.0
        %672 = vmatprep.subr.mxu0 0.0
        %673 = vmatpush1.msra.mxu0 0.0
        %674 = vmatprep.subr.mxu0 0.0
        %675 = vmatpush1.msra.mxu0 0.0
        %676 = vmatprep.subr.mxu0 0.0
        %677 = vmatpush1.msra.mxu0 0.0
        %678 = vmatprep.subr.mxu0 0.0
        %679 = vmatpush1.msra.mxu0 0.0
        %680 = vmatprep.subr.mxu0 0.0
        %681 = vmatpush1.msra.mxu0 0.0
        %682 = vmatprep.subr.mxu0 0.0
        %683 = vmatpush1.msra.mxu0 0.0
        %684 = vmatprep.subr.mxu0 0.0
        %685 = vmatpush1.msra.mxu0 0.0
        %686 = vmatprep.subr.mxu0 0.0
        %687 = vmatpush1.msra.mxu0 0.0
        %688 = vmatprep.subr.mxu0 0.0
        %689 = vmatpush1.msra.mxu0 0.0
        %690 = vmatprep.subr.mxu0 0.0
        %691 = vmatpush1.msra.mxu0 0.0
        %692 = vmatprep.subr.mxu0 0.0
        %693 = vmatpush1.msra.mxu0 0.0
        %694 = vmatprep.subr.mxu0 0.0
        %695 = vmatpush1.msra.mxu0 0.0
        %696 = vmatprep.subr.mxu0 0.0
        %697 = vmatpush1.msra.mxu0 0.0
        %698 = vmatprep.subr.mxu0 0.0
        %699 = vmatpush1.msra.mxu0 0.0
        %700 = vmatprep.mubr.f32.mxu0 0.0
        %701 = vmatmul.mubr.f32.gmra.mrb[0].mxu0 %v634
        %v702 = vpop.f32.mrb[0].mxu0
        %v703 = vadd.f32 0.0, %v702
        %v704 = vpop.f32.mrb[0].mxu0
        %705 = vdwg.mxu0
        %707 = vrot.lane.b32.xlu0 %v703, 16
        %v708 = vpop.permute.xlu0 %707
        %v710 = vsel %vm375, %v537, %v708
        %v711 = vld [vmem:[#allocation8] sm:$0xff]
        %v712 = vld [vmem:[#allocation8 + $0x8] sm:$0xff]
        %v713 = vld [vmem:[#allocation8 + $0x10] sm:$0xff]
        %v714 = vld [vmem:[#allocation8 + $0x18] sm:$0xff]
        %vm715 = vcmask 261120
        %v717 = vsel %vm715, %v710, 0
        %719 = vmatprep.subr.mxu0 0.0
        %720 = vmatpush1.msra.mxu0 %v711
        %721 = vmatprep.subr.mxu0 0.0
        %722 = vmatpush1.msra.mxu0 %v712
        %723 = vmatprep.subr.mxu0 0.0
        %724 = vmatpush1.msra.mxu0 %v713
        %725 = vmatprep.subr.mxu0 0.0
        %726 = vmatpush1.msra.mxu0 %v714
        %727 = vmatprep.subr.mxu0 0.0
        %728 = vmatpush1.msra.mxu0 0.0
        %729 = vmatprep.subr.mxu0 0.0
        %730 = vmatpush1.msra.mxu0 0.0
        %731 = vmatprep.subr.mxu0 0.0
        %732 = vmatpush1.msra.mxu0 0.0
        %733 = vmatprep.subr.mxu0 0.0
        %734 = vmatpush1.msra.mxu0 0.0
        %735 = vmatprep.subr.mxu0 0.0
        %736 = vmatpush1.msra.mxu0 0.0
        %737 = vmatprep.subr.mxu0 0.0
        %738 = vmatpush1.msra.mxu0 0.0
        %739 = vmatprep.subr.mxu0 0.0
        %740 = vmatpush1.msra.mxu0 0.0
        %741 = vmatprep.subr.mxu0 0.0
        %742 = vmatpush1.msra.mxu0 0.0
        %743 = vmatprep.subr.mxu0 0.0
        %744 = vmatpush1.msra.mxu0 0.0
        %745 = vmatprep.subr.mxu0 0.0
        %746 = vmatpush1.msra.mxu0 0.0
        %747 = vmatprep.subr.mxu0 0.0
        %748 = vmatpush1.msra.mxu0 0.0
        %749 = vmatprep.subr.mxu0 0.0
        %750 = vmatpush1.msra.mxu0 0.0
        %751 = vmatprep.subr.mxu0 0.0
        %752 = vmatpush1.msra.mxu0 0.0
        %753 = vmatprep.subr.mxu0 0.0
        %754 = vmatpush1.msra.mxu0 0.0
        %755 = vmatprep.subr.mxu0 0.0
        %756 = vmatpush1.msra.mxu0 0.0
        %757 = vmatprep.subr.mxu0 0.0
        %758 = vmatpush1.msra.mxu0 0.0
        %759 = vmatprep.subr.mxu0 0.0
        %760 = vmatpush1.msra.mxu0 0.0
        %761 = vmatprep.subr.mxu0 0.0
        %762 = vmatpush1.msra.mxu0 0.0
        %763 = vmatprep.subr.mxu0 0.0
        %764 = vmatpush1.msra.mxu0 0.0
        %765 = vmatprep.subr.mxu0 0.0
        %766 = vmatpush1.msra.mxu0 0.0
        %767 = vmatprep.subr.mxu0 0.0
        %768 = vmatpush1.msra.mxu0 0.0
        %769 = vmatprep.subr.mxu0 0.0
        %770 = vmatpush1.msra.mxu0 0.0
        %771 = vmatprep.subr.mxu0 0.0
        %772 = vmatpush1.msra.mxu0 0.0
        %773 = vmatprep.subr.mxu0 0.0
        %774 = vmatpush1.msra.mxu0 0.0
        %775 = vmatprep.subr.mxu0 0.0
        %776 = vmatpush1.msra.mxu0 0.0
        %777 = vmatprep.subr.mxu0 0.0
        %778 = vmatpush1.msra.mxu0 0.0
        %779 = vmatprep.subr.mxu0 0.0
        %780 = vmatpush1.msra.mxu0 0.0
        %781 = vmatprep.subr.mxu0 0.0
        %782 = vmatpush1.msra.mxu0 0.0
        %783 = vmatprep.mubr.f32.mxu0 0.0
        %784 = vmatmul.mubr.f32.gmra.mrb[0].mxu0 %v717
        %v785 = vpop.f32.mrb[0].mxu0
        %v786 = vadd.f32 0.0, %v785
        %v787 = vpop.f32.mrb[0].mxu0
        %788 = vdwg.mxu0
        %s789 = scalar_lea.vmem %s248, %s368 [#allocation3]
        %v790 = vld [vmem:[%s789] sm:$0xff]
        %v791 = vadd.f32 %v790, %v786
        %v792 = vsel %vm715, %v791, 0.0
        %793 = vadd.xlane.f32.xlu0 %v792
        %v794 = vpop.xlane.xlu0 %793
        %v795 = vrcp.pop 32.0
        %v796 = vmul.f32 %v794, %v795
        %v797 = vsub.f32 %v791, %v796
        %v798 = vmul.f32 %v797, %v797
        %v799 = vsel %vm715, %v798, 0.0
        %800 = vadd.xlane.f32.xlu0 %v799
        %v801 = vpop.xlane.xlu0 %800
        %v802 = vmul.f32 %v801, %v795
        %v803 = vadd.f32 %v802, 1e-05
        %v804 = vrsqrt.pop %v803
        %v805 = vmul.f32 %v797, %v804
        %v806 = vld [vmem:[%s3] sm:$0x1]
        %v808 = vlaneseq
        %v809 = vshrl.u32 %v808, 7
        %v810 = vsub.s32 0, %v809
        %v811 = vrot.slane %v806, %v810
        %v813 = vmul.f32 %v805, %v811
        %v814 = vld [vmem:[%s4] sm:$0x1]
        %v816 = vlaneseq
        %v817 = vshrl.u32 %v816, 7
        %v818 = vsub.s32 0, %v817
        %v819 = vrot.slane %v814, %v818
        %v821 = vadd.f32 %v813, %v819
        %822 = vst.msk [vmem:[%s282] sm:$0xff] %vm715, %v821
        %s823 = sand.u32 %s155, 1
        %s824 = scalar_lea.sflag [#allocation5], %s823
        %s825 = sand.u32 %s155, 1
        %s826 = smul.addr %s825, 8
        %s827 = scalar_lea.vmem [#allocation9], %s826
        // Predicated region
        $region57: #{tpu_custom_call.1} parent=39 // pred_check
          %p828 = pneg %p165
        $region58: #{tpu_custom_call.1} parent=39 // pred_check_branch
          %830 = sbr.rel (%p828) target = $region60
        $region59: #{tpu_custom_call.1} parent=39 // pred_region
          %s832 = ssub.s32 128, 128
          %833 = vsyncadd %s824, %s832
          %s834 = sadd.s32 %s28, %s27
          %s835 = smul.addr %s834, 128
          %s836 = scalar_lea.hbm %s5, %s835
          %s838 = sshll.u32 %s827, 4
          %s839 = int_to_ptr.vmem [resolvable:$true] %s838
          %841 = dma.vmem_to_hbm [thread:$0]  %s839, 128, %s836, %s824
        $region60: #{tpu_custom_call.1} parent=39 // pred_fallthru
          _
      $region40: #{tpu_custom_call.1} parent=5 // pred_fallthru
        _
      %p842 = scmp.le.s32.totalorder 2, %s18
      // Predicated region
      $region61: #{tpu_custom_call.1} parent=5 // pred_check
        %p843 = pneg %p842
      $region62: #{tpu_custom_call.1} parent=5 // pred_check_branch
        %845 = sbr.rel (%p843) target = $region64
      $region63: #{tpu_custom_call.1} parent=5 // pred_region
        %s846 = ssub.s32 %s18, 2
        // Predicated region
        $region65: #{tpu_custom_call.1} parent=63 // pred_check
          %p847 = pneg %p171
        $region66: #{tpu_custom_call.1} parent=63 // pred_check_branch
          %849 = sbr.rel (%p847) target = $region68
        $region67: #{tpu_custom_call.1} parent=63 // pred_region
          %s850 = sand.u32 %s156, 1
          %s851 = scalar_lea.sflag [#allocation5], %s850
          %s852 = sand.u32 %s156, 1
          %s853 = smul.addr %s852, 8
          %s854 = scalar_lea.vmem [#allocation9], %s853
          %855 = dma.done %s851, 128
        $region68: #{tpu_custom_call.1} parent=63 // pred_fallthru
          _
      $region64: #{tpu_custom_call.1} parent=5 // pred_fallthru
        _
    $region6: #{tpu_custom_call.1} parent=1 // loop_footer
      %s22 = sadd.s32 1, %s18
    $region7: #{tpu_custom_call.1} parent=1 // loop_footer_branch
      %17 = sbr.rel target = $region3
    $region8: #{tpu_custom_call.1} parent=1 // loop_exit
      _
    %856 = vsyncpa [#allocation4], 1
    %s857 = scalar_lea.sflag [#allocation4], 1
    %858 = vsyncpa %s857, 1
    %859 = vsyncpa [#allocation7], 1
    %860 = vsyncpa [#allocation5], 1
    %s861 = scalar_lea.sflag [#allocation5], 1
    %862 = vsyncpa %s861, 1

</llo_original>
